<compile_context>
chip_gen: v7x
topology: tpu7x:2x2x1
jax: 0.10.0
libtpu: 0.0.40
codegen_flags: <defaults>
</compile_context>

<pallas_src>
import functools

import jax
import jax.numpy as jnp
from jax import lax
from jax.experimental import pallas as pl
from jax.experimental.pallas import tpu as pltpu

LANES = 128
MAX_BLOCK_ROWS = 4096   # 4096 x 128 x 4B = 2 MiB per f32 input block
NCORES = 2              # v7x has 2 TensorCores/chip; harmless on v5e/v6e


def _partial_sums_kernel(x_ref, t_ref, o_xt_ref, o_s_ref, *,
                         block_rows, sub, blocks_per_core, rows, needs_mask):
    i = pl.program_id(1)

    @pl.when(i == 0)
    def _():
        o_xt_ref[...] = jnp.zeros_like(o_xt_ref)
        o_s_ref[...] = jnp.zeros_like(o_s_ref)

    x = x_ref[...].astype(jnp.float32)
    t = t_ref[...].astype(jnp.float32)
    xt = x * t
    s = x + t

    def accumulate(xt_val, s_val):
        # Fold (block_rows, 128) -> (sub, 128) with pure elementwise vreg adds
        # (tile-aligned reshape; no cross-lane work in the hot loop).
        o_xt_ref[...] += xt_val.reshape(-1, sub, LANES).sum(axis=0)
        o_s_ref[...] += s_val.reshape(-1, sub, LANES).sum(axis=0)

    if needs_mask:
        # Some blocks extend past the logical end of the data (partial last
        # block, or clamped/duplicated work items on the core-split axis).
        c = pl.program_id(0)
        row0 = (c * blocks_per_core + i) * block_rows
        is_full = (row0 + block_rows) <= rows

        @pl.when(is_full)
        def _():
            accumulate(xt, s)

        @pl.when(jnp.logical_not(is_full))
        def _():
            local_row = lax.broadcasted_iota(jnp.int32, (block_rows, LANES), 0)
            valid = (row0 + local_row) < rows
            accumulate(jnp.where(valid, xt, 0.0), jnp.where(valid, s, 0.0))
    else:
        accumulate(xt, s)


def log_cosh_dice_loss(inputs, targets, smooth=1.0):
    x = jnp.ravel(inputs)
    t = jnp.ravel(targets)
    n = x.shape[0]

    lane_pad = (-n) % LANES
    if lane_pad:
        # Only copies when n is not lane-aligned; zero padding is sum-safe.
        x = jnp.pad(x, (0, lane_pad))
        t = jnp.pad(t, (0, lane_pad))
    rows = (n + lane_pad) // LANES
    x2 = x.reshape(rows, LANES)
    t2 = t.reshape(rows, LANES)

    block_rows = min(MAX_BLOCK_ROWS, rows)
    # Accumulator sublane depth: 8 when the block is tile aligned, otherwise
    # keep the whole (small, single) block so every shape stays legal.
    sub = 8 if block_rows % 8 == 0 else block_rows
    num_blocks = pl.cdiv(rows, block_rows)
    ncores = min(NCORES, num_blocks)
    blocks_per_core = pl.cdiv(num_blocks, ncores)
    covered_rows = ncores * blocks_per_core * block_rows
    needs_mask = covered_rows != rows
    needs_clamp = (ncores * blocks_per_core) != num_blocks

    def in_index_map(c, i):
        blk = c * blocks_per_core + i
        if needs_clamp:
            # Extra work items on the core-split axis re-read the last valid
            # block; their contribution is fully masked inside the kernel.
            blk = jnp.minimum(blk, num_blocks - 1)
        return (blk, 0)

    def out_index_map(c, i):
        return (c, 0)

    kernel = functools.partial(
        _partial_sums_kernel, block_rows=block_rows, sub=sub,
        blocks_per_core=blocks_per_core, rows=rows, needs_mask=needs_mask)

    part_xt, part_s = pl.pallas_call(
        kernel,
        out_shape=(
            jax.ShapeDtypeStruct((ncores * sub, LANES), jnp.float32),
            jax.ShapeDtypeStruct((ncores * sub, LANES), jnp.float32),
        ),
        grid_spec=pltpu.PrefetchScalarGridSpec(
            num_scalar_prefetch=0,
            grid=(ncores, blocks_per_core),
            in_specs=[
                pl.BlockSpec((block_rows, LANES), in_index_map),
                pl.BlockSpec((block_rows, LANES), in_index_map),
            ],
            out_specs=[
                pl.BlockSpec((sub, LANES), out_index_map),
                pl.BlockSpec((sub, LANES), out_index_map),
            ],
        ),
        compiler_params=pltpu.CompilerParams(
            dimension_semantics=("parallel", "arbitrary")),
    )(x2, t2)

    # Tiny epilogue in JAX: final cross-lane reduction + scalar log-cosh-dice.
    sum_xt = jnp.sum(part_xt)
    sum_x_plus_t = jnp.sum(part_s)
    dice = (2.0 * sum_xt + smooth) / (sum_x_plus_t + smooth)
    dice_loss = 1.0 - dice
    cosh_dl = (jnp.exp(dice_loss) + jnp.exp(-dice_loss)) / 2.0
    return jnp.log(cosh_dl)


def _reference(inputs, targets, smooth=1.0):
    x = jnp.ravel(inputs).astype(jnp.float32)
    t = jnp.ravel(targets).astype(jnp.float32)
    intersection = jnp.sum(x * t)
    dice = (2.0 * intersection + smooth) / (jnp.sum(x) + jnp.sum(t) + smooth)
    dl = 1.0 - dice
    return jnp.log((jnp.exp(dl) + jnp.exp(-dl)) / 2.0)


if __name__ == "__main__":
    key = jax.random.PRNGKey(0)

    # Primary case: typical segmentation tensors (sigmoid probs vs. binary mask).
    k1, k2 = jax.random.split(key)
    inputs = jax.nn.sigmoid(jax.random.normal(k1, (2, 4, 16, 16), dtype=jnp.float32))
    targets = (jax.random.uniform(k2, (2, 4, 16, 16)) > 0.5).astype(jnp.float32)
    loss = jax.block_until_ready(log_cosh_dice_loss(inputs, targets))
    ref = _reference(inputs, targets)
    assert jnp.allclose(loss, ref, atol=1e-5, rtol=1e-4), (loss, ref)

    # Extra checks: multi-block + 2-core split + partial-block masking,
    # clamped work items (odd block count), and lane-misaligned sizes.
    for shape in [(4, 8, 128, 80), (5, 8, 128, 128), (3, 5, 7, 11)]:
        k1, k2, key = jax.random.split(key, 3)
        a = jax.nn.sigmoid(jax.random.normal(k1, shape, dtype=jnp.float32))
        b = (jax.random.uniform(k2, shape) > 0.5).astype(jnp.float32)
        got = jax.block_until_ready(log_cosh_dice_loss(a, b))
        want = _reference(a, b)
        assert jnp.allclose(got, want, atol=1e-5, rtol=1e-4), (shape, got, want)

    print("KERNEL_OK")
</pallas_src>

<mosaic_0001>
module attributes {stable_mosaic.version = 11 : i64} {
  func.func @_partial_sums_kernel(%arg0: i32, %arg1: i32, %arg2: memref<16x128xf32, #tpu.memory_space<vmem>>, %arg3: memref<16x128xf32, #tpu.memory_space<vmem>>, %arg4: memref<8x128xf32, #tpu.memory_space<vmem>>, %arg5: memref<8x128xf32, #tpu.memory_space<vmem>>) attributes {dimension_semantics = [#tpu.dimension_semantics<parallel>, #tpu.dimension_semantics<arbitrary>], iteration_bounds = array<i64: 1, 1>, scalar_prefetch = 0 : i64, scratch_operands = 0 : i64, tpu.core_type = #tpu.core_type<tc>, window_params = [{transform_indices = @transform_0, window_bounds = array<i64: 16, 128>}, {transform_indices = @transform_1, window_bounds = array<i64: 16, 128>}, {transform_indices = @transform_2, window_bounds = array<i64: 8, 128>}, {transform_indices = @transform_3, window_bounds = array<i64: 8, 128>}]} {
    %c0_i32 = arith.constant 0 : i32
    %0 = arith.cmpi eq, %arg1, %c0_i32 : i32
    %1 = arith.extui %0 : i1 to i32
    %c0_i32_0 = arith.constant 0 : i32
    %2 = arith.cmpi ne, %1, %c0_i32_0 : i32
    scf.if %2 {
      %cst_13 = arith.constant 0.000000e+00 : f32
      %17 = vector.broadcast %cst_13 : f32 to vector<8x128xf32>
      %c0_14 = arith.constant 0 : index
      %c0_15 = arith.constant 0 : index
      %18 = vector.load %arg4[%c0_14, %c0_15] : memref<8x128xf32, #tpu.memory_space<vmem>>, vector<8x128xf32>
      tpu.vector_store %arg4[%c0_14, %c0_15], %17 {strides = array<i32>} : memref<8x128xf32, #tpu.memory_space<vmem>>, vector<8x128xf32>,
      %cst_16 = arith.constant 0.000000e+00 : f32
      %19 = vector.broadcast %cst_16 : f32 to vector<8x128xf32>
      %c0_17 = arith.constant 0 : index
      %c0_18 = arith.constant 0 : index
      %20 = vector.load %arg5[%c0_17, %c0_18] : memref<8x128xf32, #tpu.memory_space<vmem>>, vector<8x128xf32>
      tpu.vector_store %arg5[%c0_17, %c0_18], %19 {strides = array<i32>} : memref<8x128xf32, #tpu.memory_space<vmem>>, vector<8x128xf32>,
    } else {
    }
    %c0 = arith.constant 0 : index
    %c0_1 = arith.constant 0 : index
    %3 = vector.load %arg2[%c0, %c0_1] : memref<16x128xf32, #tpu.memory_space<vmem>>, vector<16x128xf32>
    %c0_2 = arith.constant 0 : index
    %c0_3 = arith.constant 0 : index
    %4 = vector.load %arg3[%c0_2, %c0_3] : memref<16x128xf32, #tpu.memory_space<vmem>>, vector<16x128xf32>
    %5 = arith.mulf %3, %4 : vector<16x128xf32>
    %6 = arith.addf %3, %4 : vector<16x128xf32>
    %c0_4 = arith.constant 0 : index
    %c0_5 = arith.constant 0 : index
    %7 = vector.load %arg4[%c0_4, %c0_5] : memref<8x128xf32, #tpu.memory_space<vmem>>, vector<8x128xf32>
    %8 = vector.shape_cast %5 : vector<16x128xf32> to vector<2x8x128xf32>
    %cst = arith.constant dense<0.000000e+00> : vector<8x128xf32>
    %9 = vector.multi_reduction <add>, %8, %cst [0] : vector<2x8x128xf32> to vector<8x128xf32>
    %10 = arith.addf %7, %9 : vector<8x128xf32>
    %c0_6 = arith.constant 0 : index
    %c0_7 = arith.constant 0 : index
    %11 = vector.load %arg4[%c0_6, %c0_7] : memref<8x128xf32, #tpu.memory_space<vmem>>, vector<8x128xf32>
    tpu.vector_store %arg4[%c0_6, %c0_7], %10 {strides = array<i32>} : memref<8x128xf32, #tpu.memory_space<vmem>>, vector<8x128xf32>,
    %c0_8 = arith.constant 0 : index
    %c0_9 = arith.constant 0 : index
    %12 = vector.load %arg5[%c0_8, %c0_9] : memref<8x128xf32, #tpu.memory_space<vmem>>, vector<8x128xf32>
    %13 = vector.shape_cast %6 : vector<16x128xf32> to vector<2x8x128xf32>
    %cst_10 = arith.constant dense<0.000000e+00> : vector<8x128xf32>
    %14 = vector.multi_reduction <add>, %13, %cst_10 [0] : vector<2x8x128xf32> to vector<8x128xf32>
    %15 = arith.addf %12, %14 : vector<8x128xf32>
    %c0_11 = arith.constant 0 : index
    %c0_12 = arith.constant 0 : index
    %16 = vector.load %arg5[%c0_11, %c0_12] : memref<8x128xf32, #tpu.memory_space<vmem>>, vector<8x128xf32>
    tpu.vector_store %arg5[%c0_11, %c0_12], %15 {strides = array<i32>} : memref<8x128xf32, #tpu.memory_space<vmem>>, vector<8x128xf32>,
    return
  }
  func.func @transform_0(%arg0: i32, %arg1: i32) -> (i32, i32) {
    %c1_i32 = arith.constant 1 : i32
    %0 = arith.muli %arg0, %c1_i32 : i32
    %1 = arith.addi %0, %arg1 : i32
    %c0_i32 = arith.constant 0 : i32
    %c0_i32_0 = arith.constant 0 : i32
    return %1, %c0_i32 : i32, i32
  }
  func.func @transform_1(%arg0: i32, %arg1: i32) -> (i32, i32) {
    %c1_i32 = arith.constant 1 : i32
    %0 = arith.muli %arg0, %c1_i32 : i32
    %1 = arith.addi %0, %arg1 : i32
    %c0_i32 = arith.constant 0 : i32
    %c0_i32_0 = arith.constant 0 : i32
    return %1, %c0_i32 : i32, i32
  }
  func.func @transform_2(%arg0: i32, %arg1: i32) -> (i32, i32) {
    %c0_i32 = arith.constant 0 : i32
    %c0_i32_0 = arith.constant 0 : i32
    return %arg0, %c0_i32 : i32, i32
  }
  func.func @transform_3(%arg0: i32, %arg1: i32) -> (i32, i32) {
    %c0_i32 = arith.constant 0 : i32
    %c0_i32_0 = arith.constant 0 : i32
    return %arg0, %c0_i32 : i32, i32
  }
}

</mosaic_0001>

<llo_original>
// kernel: tpu_custom_call.1
$region0: #{tpu_custom_call.1}
  #allocation0 [shape = 'u32[]', space=smem, size = 0x4, offset = 0x4, fixed_abs, tag = 'smem constant byte address 0x4 - core index']
  #allocation1 [shape = 'u32[144,128]{1,0:T(1,128)}', space=vmem, size = 0x12000, scoped, tag = 'internal scratch']
  %s0 = inlined_call_operand.hbm [shape: f32[16,128], index: 0, kind: input, shape index: {}]
  %s1 = inlined_call_operand.hbm [shape: f32[16,128], index: 1, kind: input, shape index: {}]
  %s2 = inlined_call_operand.hbm [shape: f32[8,128], index: 2, kind: output, shape index: {0}]
  %s3 = inlined_call_operand.hbm [shape: f32[8,128], index: 3, kind: output, shape index: {1}]
  %4 = xla_tuple %s2, %s3
  %s5 = sld [smem:[#allocation0]]
  $region38: #{tpu_custom_call.1} parent=0
    _
  %s7 = ssub.s32 1, %s5
  %s8 = scalar_select 0, %s7, %s5
  $region1: #{tpu_custom_call.1} parent=0
    #allocation2 [shape = 'u8[8192]{0}', space=vmem, size = 0x2000, scoped, tag = 'input window, operand 0, single buffered']
    #allocation3 [shape = 's32[1]{0}', space=sflag, size = 0x4, scoped, tag = 'scoped memory for tpu_custom_call.1']
    #allocation4 [shape = 's32[1]{0}', space=sflag, size = 0x4, scoped, tag = 'scoped memory for tpu_custom_call.1']
    #allocation5 [shape = 'u8[8192]{0}', space=vmem, size = 0x2000, scoped, tag = 'input window, operand 1, single buffered']
    #allocation6 [shape = 's32[1]{0}', space=sflag, size = 0x4, scoped, tag = 'scoped memory for tpu_custom_call.1']
    #allocation7 [shape = 'u8[4096]{0}', space=vmem, size = 0x1000, scoped, tag = 'output window, operand 0, single buffered']
    #allocation8 [shape = 'u8[4096]{0}', space=vmem, size = 0x1000, scoped, tag = 'output window, operand 1, single buffered']
    #allocation9 [shape = 's32[1]{0}', space=sflag, size = 0x4, scoped, tag = 'scoped memory for tpu_custom_call.1']
    %9 = vsyncpa [#allocation3], 0
    %10 = vsyncpa [#allocation6], 0
    %11 = vsyncpa [#allocation4], 0
    %12 = vsyncpa [#allocation9], 0
    // Predicated region
    $region2: #{tpu_custom_call.1} parent=1 // pred_check
      _
    $region3: #{tpu_custom_call.1} parent=1 // pred_check_branch
      %14 = sbr.rel (0) target = $region5
    $region4: #{tpu_custom_call.1} parent=1 // pred_region
      %s15 = sadd.s32 0, 0
      %s16 = smul.u32 2, %s15
      %s18 = ssub.s32 256, 256
      %19 = vsyncadd [#allocation3], %s18
      %s20 = smul.addr %s16, 128
      %s21 = scalar_lea.hbm %s0, %s20
      %s22 = sshll.u32 [#allocation2], 4
      %s23 = int_to_ptr.vmem [resolvable:$true] %s22
      %28 = dma.hbm_to_vmem [thread:$0]  %s21, 256, %s23, [#allocation3], 128, 128, 8
    $region5: #{tpu_custom_call.1} parent=1 // pred_fallthru
      _
    // Predicated region
    $region6: #{tpu_custom_call.1} parent=1 // pred_check
      _
    $region7: #{tpu_custom_call.1} parent=1 // pred_check_branch
      %30 = sbr.rel (0) target = $region9
    $region8: #{tpu_custom_call.1} parent=1 // pred_region
      %s31 = sadd.s32 0, 0
      %s32 = smul.u32 2, %s31
      %s34 = ssub.s32 256, 256
      %35 = vsyncadd [#allocation6], %s34
      %s36 = smul.addr %s32, 128
      %s37 = scalar_lea.hbm %s1, %s36
      %s38 = sshll.u32 [#allocation5], 4
      %s39 = int_to_ptr.vmem [resolvable:$true] %s38
      %44 = dma.hbm_to_vmem [thread:$0]  %s37, 256, %s39, [#allocation6], 128, 128, 8
    $region9: #{tpu_custom_call.1} parent=1 // pred_fallthru
      _
    // Predicated region
    $region10: #{tpu_custom_call.1} parent=1 // pred_check
      _
    $region11: #{tpu_custom_call.1} parent=1 // pred_check_branch
      %46 = sbr.rel (0) target = $region13
    $region12: #{tpu_custom_call.1} parent=1 // pred_region
      %47 = dma.done [#allocation3], 256
    $region13: #{tpu_custom_call.1} parent=1 // pred_fallthru
      _
    // Predicated region
    $region14: #{tpu_custom_call.1} parent=1 // pred_check
      _
    $region15: #{tpu_custom_call.1} parent=1 // pred_check_branch
      %49 = sbr.rel (0) target = $region17
    $region16: #{tpu_custom_call.1} parent=1 // pred_region
      %50 = dma.done [#allocation6], 256
    $region17: #{tpu_custom_call.1} parent=1 // pred_fallthru
      _
    %s51 = sadd.s32 0, 0
    %s52 = smul.u32 2, %s51
    %s53 = sadd.s32 0, 0
    %s54 = smul.u32 2, %s53
    %p55 = scmp.eq.s32.totalorder 0, 0
    // Predicated region
    $region18: #{tpu_custom_call.1} parent=1 // pred_check
      %p56 = pneg %p55
    $region19: #{tpu_custom_call.1} parent=1 // pred_check_branch
      %58 = sbr.rel (%p56) target = $region21
    $region20: #{tpu_custom_call.1} parent=1 // pred_region
      %59 = vst [vmem:[#allocation7] sm:$0xff] 0.0
      %60 = vst [vmem:[#allocation8] sm:$0xff] 0.0
    $region21: #{tpu_custom_call.1} parent=1 // pred_fallthru
      _
    %v61 = vld [vmem:[#allocation2] sm:$0xff]
    %v62 = vld [vmem:[#allocation2 + $0x8] sm:$0xff]
    %v63 = vld [vmem:[#allocation5] sm:$0xff]
    %v64 = vld [vmem:[#allocation5 + $0x8] sm:$0xff]
    %v65 = vmul.f32 %v61, %v63
    %v66 = vmul.f32 %v62, %v64
    %v67 = vadd.f32 %v61, %v63
    %v68 = vadd.f32 %v62, %v64
    %v69 = vld [vmem:[#allocation7] sm:$0xff]
    %v70 = vadd.f32 %v65, %v66
    %v71 = vadd.f32 %v69, %v70
    %72 = vst [vmem:[#allocation7] sm:$0xff] %v71
    %v73 = vld [vmem:[#allocation8] sm:$0xff]
    %v74 = vadd.f32 %v67, %v68
    %v75 = vadd.f32 %v73, %v74
    %76 = vst [vmem:[#allocation8] sm:$0xff] %v75
    // Predicated region
    $region22: #{tpu_custom_call.1} parent=1 // pred_check
      _
    $region23: #{tpu_custom_call.1} parent=1 // pred_check_branch
      %78 = sbr.rel (0) target = $region25
    $region24: #{tpu_custom_call.1} parent=1 // pred_region
      %s80 = ssub.s32 128, 128
      %81 = vsyncadd [#allocation4], %s80
      %s83 = sshll.u32 [#allocation7], 4
      %s84 = int_to_ptr.vmem [resolvable:$true] %s83
      %86 = dma.vmem_to_hbm [thread:$0]  %s84, 128, %s2, [#allocation4]
    $region25: #{tpu_custom_call.1} parent=1 // pred_fallthru
      _
    // Predicated region
    $region26: #{tpu_custom_call.1} parent=1 // pred_check
      _
    $region27: #{tpu_custom_call.1} parent=1 // pred_check_branch
      %88 = sbr.rel (0) target = $region29
    $region28: #{tpu_custom_call.1} parent=1 // pred_region
      %s90 = ssub.s32 128, 128
      %91 = vsyncadd [#allocation9], %s90
      %s93 = sshll.u32 [#allocation8], 4
      %s94 = int_to_ptr.vmem [resolvable:$true] %s93
      %96 = dma.vmem_to_hbm [thread:$0]  %s94, 128, %s3, [#allocation9]
    $region29: #{tpu_custom_call.1} parent=1 // pred_fallthru
      _
    // Predicated region
    $region30: #{tpu_custom_call.1} parent=1 // pred_check
      _
    $region31: #{tpu_custom_call.1} parent=1 // pred_check_branch
      %98 = sbr.rel (0) target = $region33
    $region32: #{tpu_custom_call.1} parent=1 // pred_region
      %99 = dma.done [#allocation4], 128
    $region33: #{tpu_custom_call.1} parent=1 // pred_fallthru
      _
    // Predicated region
    $region34: #{tpu_custom_call.1} parent=1 // pred_check
      _
    $region35: #{tpu_custom_call.1} parent=1 // pred_check_branch
      %101 = sbr.rel (0) target = $region37
    $region36: #{tpu_custom_call.1} parent=1 // pred_region
      %102 = dma.done [#allocation9], 128
    $region37: #{tpu_custom_call.1} parent=1 // pred_fallthru
      _
    %103 = vsyncpa [#allocation3], 1
    %104 = vsyncpa [#allocation6], 1
    %105 = vsyncpa [#allocation4], 1
    %106 = vsyncpa [#allocation9], 1

</llo_original>
